<compile_context>
chip_gen: v6e
topology: v6e:2x2x1
jax: 0.10.0
libtpu: 0.0.40
codegen_flags: <defaults>
</compile_context>

<pallas_src>
import functools

import numpy as np
import jax
import jax.numpy as jnp
from jax.experimental import pallas as pl
from jax.experimental.pallas import tpu as pltpu

S_DIM = 16        # state dim (small, consistent with a DDPG critic)
A_DIM = 4         # action dim
H1 = 400
H2 = 300
H1P = 512         # H1 zero-padded to a multiple of 128
H2P = 384         # H2 zero-padded to a multiple of 128
KIN = S_DIM + A_DIM + 1   # fused first-layer contraction dim: [x | a | 1]
KOUT = H1P + H2P          # fused first-layer output lanes
MAX_BM = 512      # batch tile cap (multiple of 8; full batch when B <= 512)
BATCH = 8


def _critic_kernel(x_ref, a_ref, w01_ref, w2s_ref, w3_ref, b3_ref, out_ref):
    bm = x_ref.shape[0]

    # Build [x | a | 1] and cast to bf16 *in-kernel* (no wrapper XLA ops).
    ones = jnp.ones((bm, 1), dtype=jnp.float32)
    xa1 = jnp.concatenate([x_ref[...], a_ref[...], ones], axis=-1)   # [bm, 21] f32
    xa1 = xa1.astype(jnp.bfloat16)

    # Fused first MXU pass against the block-diagonal weight
    #   [[W1, 0], [0, W2a], [b1, b2]]:
    #   lanes   0..511 -> x @ W1 + b1     (layer-1 pre-activation)
    #   lanes 512..895 -> a @ W2a + b2    (layer-2 action/bias addend)
    fused = jnp.dot(xa1, w01_ref[...],
                    preferred_element_type=jnp.float32)              # [bm, 896]

    h1 = jnp.maximum(fused[:, :H1P], 0.0)     # ReLU(layer 1); padded lanes stay 0
    pre2 = fused[:, H1P:]                     # a @ W2a + b2

    # Layer 2: the big MXU pass.  Zero-padded lanes of h1 multiply zero rows
    # of W2s, so padding contributes nothing.
    h2 = jnp.dot(h1.astype(jnp.bfloat16), w2s_ref[...],
                 preferred_element_type=jnp.float32) + pre2
    h2 = jnp.maximum(h2, 0.0)

    # Layer 3 (out_features == 1): VPU multiply + lane reduction instead of a
    # nearly-empty MXU pass; w3 / b3 stay f32 for accuracy.
    q = jnp.sum(h2 * w3_ref[...], axis=-1, keepdims=True)
    out_ref[...] = q + b3_ref[...]


def prepare_params(p):
    """One-time weight preprocessing (call once, outside the hot path).

    Builds the fused block-diagonal first-layer weight
        w01[  :16 , :512] = W1.T,  w01[16:20, 512:] = W2a.T,
        w01[ 20  , :512] = b1,     w01[ 20  , 512:] = b2,
    zero-pads hidden dims to lane multiples (400->512, 300->384) and casts the
    matmul operands to bfloat16.  w3 / b3 stay f32.
    """
    w1, b1, w2, b2, w3, b3 = (p[k] for k in ("w1", "b1", "w2", "b2", "w3", "b3"))
    pad2 = H2P - H2
    w2t = w2.T                                                # [400 + a_dim, 300]

    w01 = jnp.zeros((KIN, KOUT), jnp.float32)
    w01 = w01.at[:S_DIM, :H1].set(w1.T)                       # W1.T  -> left block
    w01 = w01.at[S_DIM:S_DIM + A_DIM, H1P:H1P + H2].set(w2t[H1:])   # W2a.T -> right
    w01 = w01.at[S_DIM + A_DIM, :H1].set(b1)                  # b1 row
    w01 = w01.at[S_DIM + A_DIM, H1P:H1P + H2].set(b2)         # b2 row
    w01 = w01.astype(jnp.bfloat16)                            # [21, 896]

    w2s = (jnp.zeros((H1P, H2P), jnp.float32)
           .at[:H1, :H2].set(w2t[:H1])
           .astype(jnp.bfloat16))                             # [512, 384]

    w3p = jnp.pad(w3, ((0, 0), (0, pad2))).astype(jnp.float32)  # [1, 384]
    b3p = b3.reshape(1, 1).astype(jnp.float32)                   # [1, 1]
    return dict(w01=w01, w2s=w2s, w3=w3p, b3=b3p)


# NOTE: at tiny batches (B~8) this kernel is overhead-dominated (weight DMA +
# launch); amortize by batching more (s, a) pairs per call and/or fusing
# online+target critic evaluation into one call in the training loop.
@functools.partial(jax.jit, static_argnames=("core_parallel",))
def critic_forward(x, a, pp, *, core_parallel=False):
    """x: [B, s_dim] f32, a: [B, a_dim] f32, pp: prepare_params(...) -> q: [B, 1] f32.

    Set core_parallel=True on v7x (2 TensorCores/chip) when B > 512 so the
    batch grid axis is sharded across cores.
    """
    B = x.shape[0]
    BM = B if B <= MAX_BM else MAX_BM      # full batch when small (grid = (1,))
    Bp = BM * pl.cdiv(B, BM)
    if Bp != B:
        # Rare path: only taken when B > 512 and not a multiple of 512.
        x = jnp.pad(x, ((0, Bp - B), (0, 0)))
        a = jnp.pad(a, ((0, Bp - B), (0, 0)))

    weights = (pp["w01"], pp["w2s"], pp["w3"], pp["b3"])
    # Constant block index -> weights are DMA'd once and stay VMEM-resident
    # across batch-tile grid steps.
    resident = lambda arr: pl.BlockSpec(arr.shape, lambda i: (0,) * arr.ndim)

    batch_sem = pltpu.CORE_PARALLEL if core_parallel else pltpu.PARALLEL

    q = pl.pallas_call(
        _critic_kernel,
        out_shape=jax.ShapeDtypeStruct((Bp, 1), jnp.float32),
        grid=(Bp // BM,),
        in_specs=[pl.BlockSpec((BM, S_DIM), lambda i: (i, 0)),
                  pl.BlockSpec((BM, A_DIM), lambda i: (i, 0))]
                 + [resident(w) for w in weights],
        out_specs=pl.BlockSpec((BM, 1), lambda i: (i, 0)),
        compiler_params=pltpu.CompilerParams(
            dimension_semantics=(batch_sem,)),
    )(x, a, *weights)
    return q[:B] if Bp != B else q


def init_params(key, s_dim, a_dim):
    """Deterministic init mirroring the PyTorch module's init scheme.

    fanin_init(weight.size()) (fanin = size[0] = out_features) on every Linear
    weight, then forward1.weight overridden with U(-0.003, 0.003); biases keep
    nn.Linear's default U(+-1/sqrt(in_features)).
    """
    ks = jax.random.split(key, 6)

    def fanin_uniform(k, shape, fanin):
        v = 1.0 / np.sqrt(fanin)
        return jax.random.uniform(k, shape, jnp.float32, -v, v)

    w1 = jax.random.uniform(ks[0], (H1, s_dim), jnp.float32, -0.003, 0.003)
    b1 = fanin_uniform(ks[1], (H1,), s_dim)
    w2 = fanin_uniform(ks[2], (H2, H1 + a_dim), H2)
    b2 = fanin_uniform(ks[3], (H2,), H1 + a_dim)
    w3 = fanin_uniform(ks[4], (1, H2), 1)
    b3 = fanin_uniform(ks[5], (1,), H2)
    return dict(w1=w1, b1=b1, w2=w2, b2=b2, w3=w3, b3=b3)


def critic_ref(x, a, p):
    """Pure-JAX f32 reference (original module semantics)."""
    h1 = jax.nn.relu(x @ p["w1"].T + p["b1"])
    h2 = jax.nn.relu(jnp.concatenate([h1, a], axis=1) @ p["w2"].T + p["b2"])
    return h2 @ p["w3"].T + p["b3"]


def critic_ref_quant(x, a, p):
    """Reference applying the same bf16 quantization as the kernel (f32 accum)."""
    q16 = lambda t: t.astype(jnp.bfloat16).astype(jnp.float32)
    h1 = jax.nn.relu(q16(x) @ q16(p["w1"]).T + q16(p["b1"]))
    h2 = jax.nn.relu(q16(h1) @ q16(p["w2"][:, :H1]).T
                     + q16(a) @ q16(p["w2"][:, H1:]).T + q16(p["b2"]))
    return jnp.sum(h2 * p["w3"][0], axis=-1, keepdims=True) + p["b3"]


if __name__ == "__main__":
    key = jax.random.PRNGKey(0)
    kx, ka, kp = jax.random.split(key, 3)

    x = jax.random.normal(kx, (BATCH, S_DIM), jnp.float32)
    a = jax.random.normal(ka, (BATCH, A_DIM), jnp.float32)
    params = init_params(kp, S_DIM, A_DIM)
    prepped = prepare_params(params)          # one-time, outside the hot path

    q = critic_forward(x, a, prepped)
    jax.block_until_ready(q)

    # Tight check against a reference with identical bf16 quantization.
    q_quant = critic_ref_quant(x, a, params)
    np.testing.assert_allclose(np.asarray(q), np.asarray(q_quant),
                               rtol=1e-3, atol=1e-3)
    # Loose check against the full-f32 original semantics (bf16 weight error).
    q_f32 = critic_ref(x, a, params)
    np.testing.assert_allclose(np.asarray(q), np.asarray(q_f32),
                               rtol=5e-2, atol=2.5e-1)
    print("KERNEL_OK")
</pallas_src>

<mosaic_0001>
module attributes {stable_mosaic.version = 11 : i64} {
  func.func @_critic_kernel(%arg0: i32, %arg1: memref<8x16xf32, #tpu.memory_space<vmem>>, %arg2: memref<8x4xf32, #tpu.memory_space<vmem>>, %arg3: memref<21x896xbf16, #tpu.memory_space<vmem>>, %arg4: memref<512x384xbf16, #tpu.memory_space<vmem>>, %arg5: memref<1x384xf32, #tpu.memory_space<vmem>>, %arg6: memref<1x1xf32, #tpu.memory_space<vmem>>, %arg7: memref<8x1xf32, #tpu.memory_space<vmem>>) attributes {dimension_semantics = [#tpu.dimension_semantics<parallel>], iteration_bounds = array<i64: 1>, scalar_prefetch = 0 : i64, scratch_operands = 0 : i64, tpu.core_type = #tpu.core_type<tc>, window_params = [{transform_indices = @transform_0, window_bounds = array<i64: 8, 16>}, {transform_indices = @transform_1, window_bounds = array<i64: 8, 4>}, {pipeline_mode = #tpu.pipeline_mode<synchronous>, transform_indices = @transform_2, window_bounds = array<i64: 21, 896>}, {pipeline_mode = #tpu.pipeline_mode<synchronous>, transform_indices = @transform_3, window_bounds = array<i64: 512, 384>}, {pipeline_mode = #tpu.pipeline_mode<synchronous>, transform_indices = @transform_4, window_bounds = array<i64: 1, 384>}, {pipeline_mode = #tpu.pipeline_mode<synchronous>, transform_indices = @transform_5, window_bounds = array<i64: 1, 1>}, {transform_indices = @transform_6, window_bounds = array<i64: 8, 1>}]} {
    %cst = arith.constant 1.000000e+00 : f32
    %0 = vector.broadcast %cst : f32 to vector<8x1xf32>
    %c0 = arith.constant 0 : index
    %c0_0 = arith.constant 0 : index
    %1 = vector.load %arg1[%c0, %c0_0] : memref<8x16xf32, #tpu.memory_space<vmem>>, vector<8x16xf32>
    %c0_1 = arith.constant 0 : index
    %c0_2 = arith.constant 0 : index
    %2 = vector.load %arg2[%c0_1, %c0_2] : memref<8x4xf32, #tpu.memory_space<vmem>>, vector<8x4xf32>
    %3 = tpu.concatenate %1, %2, %0 in 1 : vector<8x16xf32>, vector<8x4xf32>, vector<8x1xf32> -> vector<8x21xf32>
    %4 = arith.truncf %3 : vector<8x21xf32> to vector<8x21xbf16>
    %c0_3 = arith.constant 0 : index
    %c0_4 = arith.constant 0 : index
    %5 = vector.load %arg3[%c0_3, %c0_4] : memref<21x896xbf16, #tpu.memory_space<vmem>>, vector<21x896xbf16>
    %cst_5 = arith.constant dense<0.000000e+00> : vector<8x896xf32>
    %6 = tpu.matmul %4, %5, %cst_5 {dimension_numbers = #tpu.dot_dimension_numbers<[1], [0], [0], [1], [0, 0, 1, 1], [], []>} : vector<8x21xbf16>, vector<21x896xbf16>, vector<8x896xf32> -> vector<8x896xf32>
    %7 = vector.extract_strided_slice %6 {offsets = [0, 0], sizes = [8, 512], strides = [1, 1]} : vector<8x896xf32> to vector<8x512xf32>
    %cst_6 = arith.constant 0.000000e+00 : f32
    %8 = vector.broadcast %cst_6 : f32 to vector<8x512xf32>
    %9 = arith.maximumf %7, %8 : vector<8x512xf32>
    %10 = vector.extract_strided_slice %6 {offsets = [0, 512], sizes = [8, 384], strides = [1, 1]} : vector<8x896xf32> to vector<8x384xf32>
    %11 = arith.truncf %9 : vector<8x512xf32> to vector<8x512xbf16>
    %c0_7 = arith.constant 0 : index
    %c0_8 = arith.constant 0 : index
    %12 = vector.load %arg4[%c0_7, %c0_8] : memref<512x384xbf16, #tpu.memory_space<vmem>>, vector<512x384xbf16>
    %cst_9 = arith.constant dense<0.000000e+00> : vector<8x384xf32>
    %13 = tpu.matmul %11, %12, %cst_9 {dimension_numbers = #tpu.dot_dimension_numbers<[1], [0], [0], [1], [0, 0, 1, 1], [], []>} : vector<8x512xbf16>, vector<512x384xbf16>, vector<8x384xf32> -> vector<8x384xf32>
    %14 = arith.addf %13, %10 : vector<8x384xf32>
    %cst_10 = arith.constant 0.000000e+00 : f32
    %15 = vector.broadcast %cst_10 : f32 to vector<8x384xf32>
    %16 = arith.maximumf %14, %15 : vector<8x384xf32>
    %c0_11 = arith.constant 0 : index
    %c0_12 = arith.constant 0 : index
    %17 = vector.load %arg5[%c0_11, %c0_12] : memref<1x384xf32, #tpu.memory_space<vmem>>, vector<1x384xf32>
    %18 = vector.broadcast %17 : vector<1x384xf32> to vector<8x384xf32>
    %19 = arith.mulf %16, %18 : vector<8x384xf32>
    %cst_13 = arith.constant dense<0.000000e+00> : vector<8xf32>
    %20 = vector.multi_reduction <add>, %19, %cst_13 [1] : vector<8x384xf32> to vector<8xf32>
    %21 = vector.shape_cast %20 : vector<8xf32> to vector<8x1xf32>
    %c0_14 = arith.constant 0 : index
    %c0_15 = arith.constant 0 : index
    %22 = vector.load %arg6[%c0_14, %c0_15] : memref<1x1xf32, #tpu.memory_space<vmem>>, vector<1x1xf32>
    %23 = vector.broadcast %22 : vector<1x1xf32> to vector<8x1xf32>
    %24 = arith.addf %21, %23 : vector<8x1xf32>
    %c0_16 = arith.constant 0 : index
    %c0_17 = arith.constant 0 : index
    %25 = vector.load %arg7[%c0_16, %c0_17] : memref<8x1xf32, #tpu.memory_space<vmem>>, vector<8x1xf32>
    tpu.vector_store %arg7[%c0_16, %c0_17], %24 {strides = array<i32>} : memref<8x1xf32, #tpu.memory_space<vmem>>, vector<8x1xf32>,
    return
  }
  func.func @transform_0(%arg0: i32) -> (i32, i32) {
    %c0_i32 = arith.constant 0 : i32
    %c0_i32_0 = arith.constant 0 : i32
    return %arg0, %c0_i32 : i32, i32
  }
  func.func @transform_1(%arg0: i32) -> (i32, i32) {
    %c0_i32 = arith.constant 0 : i32
    %c0_i32_0 = arith.constant 0 : i32
    return %arg0, %c0_i32 : i32, i32
  }
  func.func @transform_2(%arg0: i32) -> (i32, i32) {
    %c0_i32 = arith.constant 0 : i32
    %c0_i32_0 = arith.constant 0 : i32
    %c0_i32_1 = arith.constant 0 : i32
    return %c0_i32, %c0_i32_0 : i32, i32
  }
  func.func @transform_3(%arg0: i32) -> (i32, i32) {
    %c0_i32 = arith.constant 0 : i32
    %c0_i32_0 = arith.constant 0 : i32
    %c0_i32_1 = arith.constant 0 : i32
    return %c0_i32, %c0_i32_0 : i32, i32
  }
  func.func @transform_4(%arg0: i32) -> (i32, i32) {
    %c0_i32 = arith.constant 0 : i32
    %c0_i32_0 = arith.constant 0 : i32
    %c0_i32_1 = arith.constant 0 : i32
    return %c0_i32, %c0_i32_0 : i32, i32
  }
  func.func @transform_5(%arg0: i32) -> (i32, i32) {
    %c0_i32 = arith.constant 0 : i32
    %c0_i32_0 = arith.constant 0 : i32
    %c0_i32_1 = arith.constant 0 : i32
    return %c0_i32, %c0_i32_0 : i32, i32
  }
  func.func @transform_6(%arg0: i32) -> (i32, i32) {
    %c0_i32 = arith.constant 0 : i32
    %c0_i32_0 = arith.constant 0 : i32
    return %arg0, %c0_i32 : i32, i32
  }
}

</mosaic_0001>

<llo_original>
// kernel: critic_forward.1
$region0: #{critic_forward.1}
  #allocation0 [shape = 'u32[]', space=smem, size = 0x4, offset = 0x4, fixed_abs, tag = 'smem constant byte address 0x4 - core index']
  #allocation1 [shape = 'u32[144,128]{1,0:T(1,128)}', space=vmem, size = 0x12000, scoped, tag = 'internal scratch']
  #allocation2 [shape = 'f32[1,1]{1,0:T(1,128)S(1)}', space=vmem, size = 0x200, scoped, tag = 'scoped memory for critic_forward.1']
  %s0 = inlined_call_operand.vmem [shape: f32[8,16], index: 0, kind: input, shape index: {}]
  %s1 = inlined_call_operand.vmem [shape: f32[8,4], index: 1, kind: input, shape index: {}]
  %s2 = inlined_call_operand.hbm [shape: bf16[21,896], index: 2, kind: input, shape index: {}]
  %s3 = inlined_call_operand.hbm [shape: bf16[512,384], index: 3, kind: input, shape index: {}]
  %s4 = inlined_call_operand.vmem [shape: f32[1,384], index: 4, kind: input, shape index: {}]
  %s5 = inlined_call_operand.<no memory space> [shape: f32[1,1], index: 5, kind: input, shape index: {}]
  %s6 = inlined_call_operand.vmem [shape: f32[8,1], index: 6, kind: output, shape index: {}]
  %s7 = sld [smem:[#allocation0]]
  $region42: #{critic_forward.1} parent=0
    _
  %s9 = ssub.s32 1, %s7
  %s10 = scalar_select 0, %s9, %s7
  %v11 = vstv %s5
  %12 = vst [vmem:[#allocation2] sm:$0x1] %v11
  $region1: #{critic_forward.1} parent=0
    #allocation3 [shape = 'u8[43008]{0}', space=vmem, size = 0xa800, scoped, tag = 'input window, operand 2, single buffered']
    #allocation4 [shape = 's32[1]{0}', space=sflag, size = 0x4, scoped, tag = 'scoped memory for critic_forward.1']
    #allocation5 [shape = 'u8[393216]{0}', space=vmem, size = 0x60000, scoped, tag = 'input window, operand 3, single buffered']
    #allocation6 [shape = 's32[1]{0}', space=sflag, size = 0x4, scoped, tag = 'scoped memory for critic_forward.1']
    %13 = vsyncpa [#allocation4], 0
    %14 = vsyncpa [#allocation6], 0
    // Predicated region
    $region2: #{critic_forward.1} parent=1 // pred_check
      _
    $region3: #{critic_forward.1} parent=1 // pred_check_branch
      %16 = sbr.rel (0) target = $region5
    $region4: #{critic_forward.1} parent=1 // pred_region
      _
    $region5: #{critic_forward.1} parent=1 // pred_fallthru
      _
    // Predicated region
    $region6: #{critic_forward.1} parent=1 // pred_check
      _
    $region7: #{critic_forward.1} parent=1 // pred_check_branch
      %18 = sbr.rel (0) target = $region9
    $region8: #{critic_forward.1} parent=1 // pred_region
      _
    $region9: #{critic_forward.1} parent=1 // pred_fallthru
      _
    // Predicated region
    $region10: #{critic_forward.1} parent=1 // pred_check
      _
    $region11: #{critic_forward.1} parent=1 // pred_check_branch
      %20 = sbr.rel (0) target = $region13
    $region12: #{critic_forward.1} parent=1 // pred_region
      %s22 = ssub.s32 1344, 1344
      %23 = vsyncadd [#allocation4], %s22
      %s24 = sshll.u32 [#allocation3], 4
      %s25 = int_to_ptr.vmem [resolvable:$true] %s24
      %30 = dma.hbm_to_vmem [thread:$0]  %s2, 1344, %s25, [#allocation4], 448, 448, 28
    $region13: #{critic_forward.1} parent=1 // pred_fallthru
      _
    // Predicated region
    $region14: #{critic_forward.1} parent=1 // pred_check
      _
    $region15: #{critic_forward.1} parent=1 // pred_check_branch
      %32 = sbr.rel (0) target = $region17
    $region16: #{critic_forward.1} parent=1 // pred_region
      %s34 = ssub.s32 12288, 12288
      %35 = vsyncadd [#allocation6], %s34
      %s36 = sshll.u32 [#allocation5], 4
      %s37 = int_to_ptr.vmem [resolvable:$true] %s36
      %42 = dma.hbm_to_vmem [thread:$0]  %s3, 12288, %s37, [#allocation6], 192, 192, 12
    $region17: #{critic_forward.1} parent=1 // pred_fallthru
      _
    // Predicated region
    $region18: #{critic_forward.1} parent=1 // pred_check
      _
    $region19: #{critic_forward.1} parent=1 // pred_check_branch
      %44 = sbr.rel (0) target = $region21
    $region20: #{critic_forward.1} parent=1 // pred_region
      _
    $region21: #{critic_forward.1} parent=1 // pred_fallthru
      _
    // Predicated region
    $region22: #{critic_forward.1} parent=1 // pred_check
      _
    $region23: #{critic_forward.1} parent=1 // pred_check_branch
      %46 = sbr.rel (0) target = $region25
    $region24: #{critic_forward.1} parent=1 // pred_region
      _
    $region25: #{critic_forward.1} parent=1 // pred_fallthru
      _
    // Predicated region
    $region26: #{critic_forward.1} parent=1 // pred_check
      _
    $region27: #{critic_forward.1} parent=1 // pred_check_branch
      %48 = sbr.rel (0) target = $region29
    $region28: #{critic_forward.1} parent=1 // pred_region
      %49 = dma.done [#allocation4], 1344
    $region29: #{critic_forward.1} parent=1 // pred_fallthru
      _
    // Predicated region
    $region30: #{critic_forward.1} parent=1 // pred_check
      _
    $region31: #{critic_forward.1} parent=1 // pred_check_branch
      %51 = sbr.rel (0) target = $region33
    $region32: #{critic_forward.1} parent=1 // pred_region
      %52 = dma.done [#allocation6], 12288
    $region33: #{critic_forward.1} parent=1 // pred_fallthru
      _
    %v54 = vld [vmem:[%s0] sm:$0xff]
    %v55 = vld [vmem:[%s1] sm:$0xff]
    %57 = vrot.lane.b32.xlu0 %v55, 16
    %v58 = vpop.permute.xlu0 %57
    %vm60 = vcmask 130048
    %v61 = vsel %vm60, %v54, %v58
    %vm62 = vcmask 162816
    %v63 = vsel %vm62, %v61, 1.0
    %v64 = vpack.c.bf16 %v63, %v63
    %v65 = vld [vmem:[#allocation3] sm:$0xff]
    %v66 = vld [vmem:[#allocation3 + $0x8] sm:$0xff]
    %v67 = vld [vmem:[#allocation3 + $0x10] sm:$0xff]
    %v68 = vld [vmem:[#allocation3 + $0x18] sm:$0xf]
    %v69 = vld [vmem:[#allocation3 + $0x1c] sm:$0xff]
    %v70 = vld [vmem:[#allocation3 + $0x24] sm:$0xff]
    %v71 = vld [vmem:[#allocation3 + $0x2c] sm:$0xff]
    %v72 = vld [vmem:[#allocation3 + $0x34] sm:$0xf]
    %v73 = vld [vmem:[#allocation3 + $0x38] sm:$0x77]
    %v74 = vld [vmem:[#allocation3 + $0x40] sm:$0x77]
    %v75 = vld [vmem:[#allocation3 + $0x48] sm:$0x77]
    %v76 = vld [vmem:[#allocation3 + $0x50] sm:$0x7]
    %v89 = vunpack.c.l.b16 %v65
    %v90 = vunpack.c.h.b16 %v65
    %v91 = vunpack.c.l.b16 %v66
    %v92 = vunpack.c.h.b16 %v66
    %v93 = vunpack.c.l.b16 %v67
    %v94 = vunpack.c.h.b16 %v67
    %v95 = vunpack.c.l.b16 %v68
    %v96 = vunpack.c.l.b16 %v69
    %v97 = vunpack.c.h.b16 %v69
    %v98 = vunpack.c.l.b16 %v70
    %v99 = vunpack.c.h.b16 %v70
    %v100 = vunpack.c.l.b16 %v71
    %v101 = vunpack.c.h.b16 %v71
    %v102 = vunpack.c.l.b16 %v72
    %v103 = vunpack.c.l.b16 %v73
    %v104 = vunpack.c.h.b16 %v73
    %v105 = vunpack.c.l.b16 %v74
    %v106 = vunpack.c.h.b16 %v74
    %v107 = vunpack.c.l.b16 %v75
    %v108 = vunpack.c.h.b16 %v75
    %v109 = vunpack.c.l.b16 %v76
    %v110 = vpack.c.b16 %v96, %v89
    %v111 = vpack.c.b16 %v97, %v90
    %v112 = vpack.c.b16 %v98, %v91
    %v113 = vpack.c.b16 %v99, %v92
    %v114 = vpack.c.b16 %v100, %v93
    %v115 = vpack.c.b16 %v101, %v94
    %v116 = vpack.c.b16 %v102, %v95
    %v117 = vpack.c.b16 %v103, %v103
    %v118 = vpack.c.b16 %v104, %v104
    %v119 = vpack.c.b16 %v105, %v105
    %v120 = vpack.c.b16 %v106, %v106
    %v121 = vpack.c.b16 %v107, %v107
    %v122 = vpack.c.b16 %v108, %v108
    %v123 = vpack.c.b16 %v109, %v109
    %vm131 = vcmask 171008
    %v133 = vsel %vm131, %v64, 0
    %vm135 = vcmask 1041408
    %vm136 = vcmask 1042432
    %v137 = vsel %vm135, 4294967295, 65535
    %v138 = vsel %vm136, %v137, 0
    %v140 = vand.u32 %v117, %v138
    %v143 = vand.u32 %v118, %v138
    %v146 = vand.u32 %v119, %v138
    %v149 = vand.u32 %v120, %v138
    %v152 = vand.u32 %v121, %v138
    %v155 = vand.u32 %v122, %v138
    %v158 = vand.u32 %v123, %v138
    %160 = vmatprep.subr.bf16.mxu0 0
    %161 = vmatpush1.bf16.msra.mxu0 0
    %162 = vmatprep.subr.bf16.mxu0 0
    %163 = vmatpush1.bf16.msra.mxu0 0
    %164 = vmatprep.subr.bf16.mxu0 0
    %165 = vmatpush1.bf16.msra.mxu0 0
    %166 = vmatprep.subr.bf16.mxu0 0
    %167 = vmatpush1.bf16.msra.mxu0 0
    %168 = vmatprep.subr.bf16.mxu0 0
    %169 = vmatpush1.bf16.msra.mxu0 0
    %170 = vmatprep.subr.bf16.mxu0 0
    %171 = vmatpush1.bf16.msra.mxu0 0
    %172 = vmatprep.subr.bf16.mxu0 %v143
    %173 = vmatpush1.bf16.msra.mxu0 %v140
    %174 = vmatprep.subr.bf16.mxu0 %v111
    %175 = vmatpush1.bf16.msra.mxu0 %v110
    %176 = vmatprep.subr.bf16.mxu0 0
    %177 = vmatpush2.bf16.msra.mxu0 0
    %178 = vmatprep.subr.bf16.mxu0 0
    %179 = vmatpush2.bf16.msra.mxu0 0
    %180 = vmatprep.subr.bf16.mxu0 0
    %181 = vmatpush2.bf16.msra.mxu0 0
    %182 = vmatprep.subr.bf16.mxu0 0
    %183 = vmatpush2.bf16.msra.mxu0 0
    %184 = vmatprep.subr.bf16.mxu0 0
    %185 = vmatpush2.bf16.msra.mxu0 0
    %186 = vmatprep.subr.bf16.mxu0 0
    %187 = vmatpush2.bf16.msra.mxu0 0
    %188 = vmatprep.subr.bf16.mxu0 0
    %189 = vmatpush2.bf16.msra.mxu0 0
    %190 = vmatprep.subr.bf16.mxu0 0
    %191 = vmatpush2.bf16.msra.mxu0 0
    %192 = vmatprep.mubr.bf16.mxu0 0
    %193 = vmatmul.mubr.bf16.gmra.mxu0 %v133
    %v194 = vpop.f32.mrf.mxu0
    %v195 = vadd.f32 0.0, %v194
    %v196 = vpop.f32.mrf.mxu0
    %v197 = vadd.f32 0.0, %v196
    %v198 = vpop.f32.mrf.mxu0
    %v199 = vpop.f32.mrf.mxu0
    %200 = vdwg.mxu0
    %201 = vmatprep.subr.bf16.mxu0 0
    %202 = vmatpush1.bf16.msra.mxu0 0
    %203 = vmatprep.subr.bf16.mxu0 0
    %204 = vmatpush1.bf16.msra.mxu0 0
    %205 = vmatprep.subr.bf16.mxu0 0
    %206 = vmatpush1.bf16.msra.mxu0 0
    %207 = vmatprep.subr.bf16.mxu0 0
    %208 = vmatpush1.bf16.msra.mxu0 0
    %209 = vmatprep.subr.bf16.mxu0 0
    %210 = vmatpush1.bf16.msra.mxu0 0
    %211 = vmatprep.subr.bf16.mxu0 0
    %212 = vmatpush1.bf16.msra.mxu0 0
    %213 = vmatprep.subr.bf16.mxu0 %v149
    %214 = vmatpush1.bf16.msra.mxu0 %v146
    %215 = vmatprep.subr.bf16.mxu0 %v113
    %216 = vmatpush1.bf16.msra.mxu0 %v112
    %217 = vmatprep.subr.bf16.mxu0 0
    %218 = vmatpush2.bf16.msra.mxu0 0
    %219 = vmatprep.subr.bf16.mxu0 0
    %220 = vmatpush2.bf16.msra.mxu0 0
    %221 = vmatprep.subr.bf16.mxu0 0
    %222 = vmatpush2.bf16.msra.mxu0 0
    %223 = vmatprep.subr.bf16.mxu0 0
    %224 = vmatpush2.bf16.msra.mxu0 0
    %225 = vmatprep.subr.bf16.mxu0 0
    %226 = vmatpush2.bf16.msra.mxu0 0
    %227 = vmatprep.subr.bf16.mxu0 0
    %228 = vmatpush2.bf16.msra.mxu0 0
    %229 = vmatprep.subr.bf16.mxu0 0
    %230 = vmatpush2.bf16.msra.mxu0 0
    %231 = vmatprep.subr.bf16.mxu0 0
    %232 = vmatpush2.bf16.msra.mxu0 0
    %233 = vmatprep.mubr.bf16.mxu0 0
    %234 = vmatmul.mubr.bf16.gmra.mxu0 %v133
    %v235 = vpop.f32.mrf.mxu0
    %v236 = vadd.f32 0.0, %v235
    %v237 = vpop.f32.mrf.mxu0
    %v238 = vadd.f32 0.0, %v237
    %v239 = vpop.f32.mrf.mxu0
    %v240 = vpop.f32.mrf.mxu0
    %241 = vdwg.mxu0
    %242 = vmatprep.subr.bf16.mxu0 0
    %243 = vmatpush1.bf16.msra.mxu0 0
    %244 = vmatprep.subr.bf16.mxu0 0
    %245 = vmatpush1.bf16.msra.mxu0 0
    %246 = vmatprep.subr.bf16.mxu0 0
    %247 = vmatpush1.bf16.msra.mxu0 0
    %248 = vmatprep.subr.bf16.mxu0 0
    %249 = vmatpush1.bf16.msra.mxu0 0
    %250 = vmatprep.subr.bf16.mxu0 0
    %251 = vmatpush1.bf16.msra.mxu0 0
    %252 = vmatprep.subr.bf16.mxu0 0
    %253 = vmatpush1.bf16.msra.mxu0 0
    %254 = vmatprep.subr.bf16.mxu0 %v155
    %255 = vmatpush1.bf16.msra.mxu0 %v152
    %256 = vmatprep.subr.bf16.mxu0 %v115
    %257 = vmatpush1.bf16.msra.mxu0 %v114
    %258 = vmatprep.subr.bf16.mxu0 0
    %259 = vmatpush2.bf16.msra.mxu0 0
    %260 = vmatprep.subr.bf16.mxu0 0
    %261 = vmatpush2.bf16.msra.mxu0 0
    %262 = vmatprep.subr.bf16.mxu0 0
    %263 = vmatpush2.bf16.msra.mxu0 0
    %264 = vmatprep.subr.bf16.mxu0 0
    %265 = vmatpush2.bf16.msra.mxu0 0
    %266 = vmatprep.subr.bf16.mxu0 0
    %267 = vmatpush2.bf16.msra.mxu0 0
    %268 = vmatprep.subr.bf16.mxu0 0
    %269 = vmatpush2.bf16.msra.mxu0 0
    %270 = vmatprep.subr.bf16.mxu0 0
    %271 = vmatpush2.bf16.msra.mxu0 0
    %272 = vmatprep.subr.bf16.mxu0 0
    %273 = vmatpush2.bf16.msra.mxu0 0
    %274 = vmatprep.mubr.bf16.mxu0 0
    %275 = vmatmul.mubr.bf16.gmra.mxu0 %v133
    %v276 = vpop.f32.mrf.mxu0
    %v277 = vadd.f32 0.0, %v276
    %v278 = vpop.f32.mrf.mxu0
    %v279 = vadd.f32 0.0, %v278
    %v280 = vpop.f32.mrf.mxu0
    %v281 = vpop.f32.mrf.mxu0
    %282 = vdwg.mxu0
    %283 = vmatprep.subr.bf16.mxu0 0
    %284 = vmatpush1.bf16.msra.mxu0 0
    %285 = vmatprep.subr.bf16.mxu0 0
    %286 = vmatpush1.bf16.msra.mxu0 0
    %287 = vmatprep.subr.bf16.mxu0 0
    %288 = vmatpush1.bf16.msra.mxu0 0
    %289 = vmatprep.subr.bf16.mxu0 0
    %290 = vmatpush1.bf16.msra.mxu0 0
    %291 = vmatprep.subr.bf16.mxu0 0
    %292 = vmatpush1.bf16.msra.mxu0 0
    %293 = vmatprep.subr.bf16.mxu0 0
    %294 = vmatpush1.bf16.msra.mxu0 0
    %295 = vmatprep.subr.bf16.mxu0 0
    %296 = vmatpush1.bf16.msra.mxu0 %v158
    %297 = vmatprep.subr.bf16.mxu0 0
    %298 = vmatpush1.bf16.msra.mxu0 %v116
    %299 = vmatprep.subr.bf16.mxu0 0
    %300 = vmatpush2.bf16.msra.mxu0 0
    %301 = vmatprep.subr.bf16.mxu0 0
    %302 = vmatpush2.bf16.msra.mxu0 0
    %303 = vmatprep.subr.bf16.mxu0 0
    %304 = vmatpush2.bf16.msra.mxu0 0
    %305 = vmatprep.subr.bf16.mxu0 0
    %306 = vmatpush2.bf16.msra.mxu0 0
    %307 = vmatprep.subr.bf16.mxu0 0
    %308 = vmatpush2.bf16.msra.mxu0 0
    %309 = vmatprep.subr.bf16.mxu0 0
    %310 = vmatpush2.bf16.msra.mxu0 0
    %311 = vmatprep.subr.bf16.mxu0 0
    %312 = vmatpush2.bf16.msra.mxu0 0
    %313 = vmatprep.subr.bf16.mxu0 0
    %314 = vmatpush2.bf16.msra.mxu0 0
    %315 = vmatprep.mubr.bf16.mxu0 0
    %316 = vmatmul.mubr.bf16.gmra.mxu0 %v133
    %v317 = vpop.f32.mrf.mxu0
    %v318 = vadd.f32 0.0, %v317
    %v319 = vpop.f32.mrf.mxu0
    %v320 = vpop.f32.mrf.mxu0
    %v321 = vpop.f32.mrf.mxu0
    %322 = vdwg.mxu0
    %v323 = vmax.f32 %v195, 0.0
    %v324 = vmax.f32 %v197, 0.0
    %v325 = vmax.f32 %v236, 0.0
    %v326 = vmax.f32 %v238, 0.0
    %v327 = vpack.c.bf16 %v323, %v323
    %v328 = vpack.c.bf16 %v324, %v324
    %v329 = vpack.c.bf16 %v325, %v325
    %v330 = vpack.c.bf16 %v326, %v326
    %v331 = vld [vmem:[#allocation5] sm:$0xff]
    %v332 = vld [vmem:[#allocation5 + $0x8] sm:$0xf]
    %v333 = vld [vmem:[#allocation5 + $0xc] sm:$0xff]
    %v334 = vld [vmem:[#allocation5 + $0x14] sm:$0xf]
    %v335 = vld [vmem:[#allocation5 + $0x18] sm:$0xff]
    %v336 = vld [vmem:[#allocation5 + $0x20] sm:$0xf]
    %v337 = vld [vmem:[#allocation5 + $0x24] sm:$0xff]
    %v338 = vld [vmem:[#allocation5 + $0x2c] sm:$0xf]
    %v339 = vld [vmem:[#allocation5 + $0x30] sm:$0xff]
    %v340 = vld [vmem:[#allocation5 + $0x38] sm:$0xf]
    %v341 = vld [vmem:[#allocation5 + $0x3c] sm:$0xff]
    %v342 = vld [vmem:[#allocation5 + $0x44] sm:$0xf]
    %v343 = vld [vmem:[#allocation5 + $0x48] sm:$0xff]
    %v344 = vld [vmem:[#allocation5 + $0x50] sm:$0xf]
    %v345 = vld [vmem:[#allocation5 + $0x54] sm:$0xff]
    %v346 = vld [vmem:[#allocation5 + $0x5c] sm:$0xf]
    %v347 = vld [vmem:[#allocation5 + $0x60] sm:$0xff]
    %v348 = vld [vmem:[#allocation5 + $0x68] sm:$0xf]
    %v349 = vld [vmem:[#allocation5 + $0x6c] sm:$0xff]
    %v350 = vld [vmem:[#allocation5 + $0x74] sm:$0xf]
    %v351 = vld [vmem:[#allocation5 + $0x78] sm:$0xff]
    %v352 = vld [vmem:[#allocation5 + $0x80] sm:$0xf]
    %v353 = vld [vmem:[#allocation5 + $0x84] sm:$0xff]
    %v354 = vld [vmem:[#allocation5 + $0x8c] sm:$0xf]
    %v355 = vld [vmem:[#allocation5 + $0x90] sm:$0xff]
    %v356 = vld [vmem:[#allocation5 + $0x98] sm:$0xf]
    %v357 = vld [vmem:[#allocation5 + $0x9c] sm:$0xff]
    %v358 = vld [vmem:[#allocation5 + $0xa4] sm:$0xf]
    %v359 = vld [vmem:[#allocation5 + $0xa8] sm:$0xff]
    %v360 = vld [vmem:[#allocation5 + $0xb0] sm:$0xf]
    %v361 = vld [vmem:[#allocation5 + $0xb4] sm:$0xff]
    %v362 = vld [vmem:[#allocation5 + $0xbc] sm:$0xf]
    %v363 = vld [vmem:[#allocation5 + $0xc0] sm:$0xff]
    %v364 = vld [vmem:[#allocation5 + $0xc8] sm:$0xf]
    %v365 = vld [vmem:[#allocation5 + $0xcc] sm:$0xff]
    %v366 = vld [vmem:[#allocation5 + $0xd4] sm:$0xf]
    %v367 = vld [vmem:[#allocation5 + $0xd8] sm:$0xff]
    %v368 = vld [vmem:[#allocation5 + $0xe0] sm:$0xf]
    %v369 = vld [vmem:[#allocation5 + $0xe4] sm:$0xff]
    %v370 = vld [vmem:[#allocation5 + $0xec] sm:$0xf]
    %v371 = vld [vmem:[#allocation5 + $0xf0] sm:$0xff]
    %v372 = vld [vmem:[#allocation5 + $0xf8] sm:$0xf]
    %v373 = vld [vmem:[#allocation5 + $0xfc] sm:$0xff]
    %v374 = vld [vmem:[#allocation5 + $0x104] sm:$0xf]
    %v375 = vld [vmem:[#allocation5 + $0x108] sm:$0xff]
    %v376 = vld [vmem:[#allocation5 + $0x110] sm:$0xf]
    %v377 = vld [vmem:[#allocation5 + $0x114] sm:$0xff]
    %v378 = vld [vmem:[#allocation5 + $0x11c] sm:$0xf]
    %v379 = vld [vmem:[#allocation5 + $0x120] sm:$0xff]
    %v380 = vld [vmem:[#allocation5 + $0x128] sm:$0xf]
    %v381 = vld [vmem:[#allocation5 + $0x12c] sm:$0xff]
    %v382 = vld [vmem:[#allocation5 + $0x134] sm:$0xf]
    %v383 = vld [vmem:[#allocation5 + $0x138] sm:$0xff]
    %v384 = vld [vmem:[#allocation5 + $0x140] sm:$0xf]
    %v385 = vld [vmem:[#allocation5 + $0x144] sm:$0xff]
    %v386 = vld [vmem:[#allocation5 + $0x14c] sm:$0xf]
    %v387 = vld [vmem:[#allocation5 + $0x150] sm:$0xff]
    %v388 = vld [vmem:[#allocation5 + $0x158] sm:$0xf]
    %v389 = vld [vmem:[#allocation5 + $0x15c] sm:$0xff]
    %v390 = vld [vmem:[#allocation5 + $0x164] sm:$0xf]
    %v391 = vld [vmem:[#allocation5 + $0x168] sm:$0xff]
    %v392 = vld [vmem:[#allocation5 + $0x170] sm:$0xf]
    %v393 = vld [vmem:[#allocation5 + $0x174] sm:$0xff]
    %v394 = vld [vmem:[#allocation5 + $0x17c] sm:$0xf]
    %v395 = vld [vmem:[#allocation5 + $0x180] sm:$0xff]
    %v396 = vld [vmem:[#allocation5 + $0x188] sm:$0xf]
    %v397 = vld [vmem:[#allocation5 + $0x18c] sm:$0xff]
    %v398 = vld [vmem:[#allocation5 + $0x194] sm:$0xf]
    %v399 = vld [vmem:[#allocation5 + $0x198] sm:$0xff]
    %v400 = vld [vmem:[#allocation5 + $0x1a0] sm:$0xf]
    %v401 = vld [vmem:[#allocation5 + $0x1a4] sm:$0xff]
    %v402 = vld [vmem:[#allocation5 + $0x1ac] sm:$0xf]
    %v403 = vld [vmem:[#allocation5 + $0x1b0] sm:$0xff]
    %v404 = vld [vmem:[#allocation5 + $0x1b8] sm:$0xf]
    %v405 = vld [vmem:[#allocation5 + $0x1bc] sm:$0xff]
    %v406 = vld [vmem:[#allocation5 + $0x1c4] sm:$0xf]
    %v407 = vld [vmem:[#allocation5 + $0x1c8] sm:$0xff]
    %v408 = vld [vmem:[#allocation5 + $0x1d0] sm:$0xf]
    %v409 = vld [vmem:[#allocation5 + $0x1d4] sm:$0xff]
    %v410 = vld [vmem:[#allocation5 + $0x1dc] sm:$0xf]
    %v411 = vld [vmem:[#allocation5 + $0x1e0] sm:$0xff]
    %v412 = vld [vmem:[#allocation5 + $0x1e8] sm:$0xf]
    %v413 = vld [vmem:[#allocation5 + $0x1ec] sm:$0xff]
    %v414 = vld [vmem:[#allocation5 + $0x1f4] sm:$0xf]
    %v415 = vld [vmem:[#allocation5 + $0x1f8] sm:$0xff]
    %v416 = vld [vmem:[#allocation5 + $0x200] sm:$0xf]
    %v417 = vld [vmem:[#allocation5 + $0x204] sm:$0xff]
    %v418 = vld [vmem:[#allocation5 + $0x20c] sm:$0xf]
    %v419 = vld [vmem:[#allocation5 + $0x210] sm:$0xff]
    %v420 = vld [vmem:[#allocation5 + $0x218] sm:$0xf]
    %v421 = vld [vmem:[#allocation5 + $0x21c] sm:$0xff]
    %v422 = vld [vmem:[#allocation5 + $0x224] sm:$0xf]
    %v423 = vld [vmem:[#allocation5 + $0x228] sm:$0xff]
    %v424 = vld [vmem:[#allocation5 + $0x230] sm:$0xf]
    %v425 = vld [vmem:[#allocation5 + $0x234] sm:$0xff]
    %v426 = vld [vmem:[#allocation5 + $0x23c] sm:$0xf]
    %v427 = vld [vmem:[#allocation5 + $0x240] sm:$0xff]
    %v428 = vld [vmem:[#allocation5 + $0x248] sm:$0xf]
    %v429 = vld [vmem:[#allocation5 + $0x24c] sm:$0xff]
    %v430 = vld [vmem:[#allocation5 + $0x254] sm:$0xf]
    %v431 = vld [vmem:[#allocation5 + $0x258] sm:$0xff]
    %v432 = vld [vmem:[#allocation5 + $0x260] sm:$0xf]
    %v433 = vld [vmem:[#allocation5 + $0x264] sm:$0xff]
    %v434 = vld [vmem:[#allocation5 + $0x26c] sm:$0xf]
    %v435 = vld [vmem:[#allocation5 + $0x270] sm:$0xff]
    %v436 = vld [vmem:[#allocation5 + $0x278] sm:$0xf]
    %v437 = vld [vmem:[#allocation5 + $0x27c] sm:$0xff]
    %v438 = vld [vmem:[#allocation5 + $0x284] sm:$0xf]
    %v439 = vld [vmem:[#allocation5 + $0x288] sm:$0xff]
    %v440 = vld [vmem:[#allocation5 + $0x290] sm:$0xf]
    %v441 = vld [vmem:[#allocation5 + $0x294] sm:$0xff]
    %v442 = vld [vmem:[#allocation5 + $0x29c] sm:$0xf]
    %v443 = vld [vmem:[#allocation5 + $0x2a0] sm:$0xff]
    %v444 = vld [vmem:[#allocation5 + $0x2a8] sm:$0xf]
    %v445 = vld [vmem:[#allocation5 + $0x2ac] sm:$0xff]
    %v446 = vld [vmem:[#allocation5 + $0x2b4] sm:$0xf]
    %v447 = vld [vmem:[#allocation5 + $0x2b8] sm:$0xff]
    %v448 = vld [vmem:[#allocation5 + $0x2c0] sm:$0xf]
    %v449 = vld [vmem:[#allocation5 + $0x2c4] sm:$0xff]
    %v450 = vld [vmem:[#allocation5 + $0x2cc] sm:$0xf]
    %v451 = vld [vmem:[#allocation5 + $0x2d0] sm:$0xff]
    %v452 = vld [vmem:[#allocation5 + $0x2d8] sm:$0xf]
    %v453 = vld [vmem:[#allocation5 + $0x2dc] sm:$0xff]
    %v454 = vld [vmem:[#allocation5 + $0x2e4] sm:$0xf]
    %v455 = vld [vmem:[#allocation5 + $0x2e8] sm:$0xff]
    %v456 = vld [vmem:[#allocation5 + $0x2f0] sm:$0xf]
    %v457 = vld [vmem:[#allocation5 + $0x2f4] sm:$0xff]
    %v458 = vld [vmem:[#allocation5 + $0x2fc] sm:$0xf]
    %v587 = vunpack.c.l.b16 %v331
    %v588 = vunpack.c.h.b16 %v331
    %v589 = vunpack.c.l.b16 %v332
    %v590 = vunpack.c.l.b16 %v333
    %v591 = vunpack.c.h.b16 %v333
    %v592 = vunpack.c.l.b16 %v334
    %v593 = vunpack.c.l.b16 %v335
    %v594 = vunpack.c.h.b16 %v335
    %v595 = vunpack.c.l.b16 %v336
    %v596 = vunpack.c.l.b16 %v337
    %v597 = vunpack.c.h.b16 %v337
    %v598 = vunpack.c.l.b16 %v338
    %v599 = vunpack.c.l.b16 %v339
    %v600 = vunpack.c.h.b16 %v339
    %v601 = vunpack.c.l.b16 %v340
    %v602 = vunpack.c.l.b16 %v341
    %v603 = vunpack.c.h.b16 %v341
    %v604 = vunpack.c.l.b16 %v342
    %v605 = vunpack.c.l.b16 %v343
    %v606 = vunpack.c.h.b16 %v343
    %v607 = vunpack.c.l.b16 %v344
    %v608 = vunpack.c.l.b16 %v345
    %v609 = vunpack.c.h.b16 %v345
    %v610 = vunpack.c.l.b16 %v346
    %v611 = vunpack.c.l.b16 %v347
    %v612 = vunpack.c.h.b16 %v347
    %v613 = vunpack.c.l.b16 %v348
    %v614 = vunpack.c.l.b16 %v349
    %v615 = vunpack.c.h.b16 %v349
    %v616 = vunpack.c.l.b16 %v350
    %v617 = vunpack.c.l.b16 %v351
    %v618 = vunpack.c.h.b16 %v351
    %v619 = vunpack.c.l.b16 %v352
    %v620 = vunpack.c.l.b16 %v353
    %v621 = vunpack.c.h.b16 %v353
    %v622 = vunpack.c.l.b16 %v354
    %v623 = vunpack.c.l.b16 %v355
    %v624 = vunpack.c.h.b16 %v355
    %v625 = vunpack.c.l.b16 %v356
    %v626 = vunpack.c.l.b16 %v357
    %v627 = vunpack.c.h.b16 %v357
    %v628 = vunpack.c.l.b16 %v358
    %v629 = vunpack.c.l.b16 %v359
    %v630 = vunpack.c.h.b16 %v359
    %v631 = vunpack.c.l.b16 %v360
    %v632 = vunpack.c.l.b16 %v361
    %v633 = vunpack.c.h.b16 %v361
    %v634 = vunpack.c.l.b16 %v362
    %v635 = vunpack.c.l.b16 %v363
    %v636 = vunpack.c.h.b16 %v363
    %v637 = vunpack.c.l.b16 %v364
    %v638 = vunpack.c.l.b16 %v365
    %v639 = vunpack.c.h.b16 %v365
    %v640 = vunpack.c.l.b16 %v366
    %v641 = vunpack.c.l.b16 %v367
    %v642 = vunpack.c.h.b16 %v367
    %v643 = vunpack.c.l.b16 %v368
    %v644 = vunpack.c.l.b16 %v369
    %v645 = vunpack.c.h.b16 %v369
    %v646 = vunpack.c.l.b16 %v370
    %v647 = vunpack.c.l.b16 %v371
    %v648 = vunpack.c.h.b16 %v371
    %v649 = vunpack.c.l.b16 %v372
    %v650 = vunpack.c.l.b16 %v373
    %v651 = vunpack.c.h.b16 %v373
    %v652 = vunpack.c.l.b16 %v374
    %v653 = vunpack.c.l.b16 %v375
    %v654 = vunpack.c.h.b16 %v375
    %v655 = vunpack.c.l.b16 %v376
    %v656 = vunpack.c.l.b16 %v377
    %v657 = vunpack.c.h.b16 %v377
    %v658 = vunpack.c.l.b16 %v378
    %v659 = vunpack.c.l.b16 %v379
    %v660 = vunpack.c.h.b16 %v379
    %v661 = vunpack.c.l.b16 %v380
    %v662 = vunpack.c.l.b16 %v381
    %v663 = vunpack.c.h.b16 %v381
    %v664 = vunpack.c.l.b16 %v382
    %v665 = vunpack.c.l.b16 %v383
    %v666 = vunpack.c.h.b16 %v383
    %v667 = vunpack.c.l.b16 %v384
    %v668 = vunpack.c.l.b16 %v385
    %v669 = vunpack.c.h.b16 %v385
    %v670 = vunpack.c.l.b16 %v386
    %v671 = vunpack.c.l.b16 %v387
    %v672 = vunpack.c.h.b16 %v387
    %v673 = vunpack.c.l.b16 %v388
    %v674 = vunpack.c.l.b16 %v389
    %v675 = vunpack.c.h.b16 %v389
    %v676 = vunpack.c.l.b16 %v390
    %v677 = vunpack.c.l.b16 %v391
    %v678 = vunpack.c.h.b16 %v391
    %v679 = vunpack.c.l.b16 %v392
    %v680 = vunpack.c.l.b16 %v393
    %v681 = vunpack.c.h.b16 %v393
    %v682 = vunpack.c.l.b16 %v394
    %v683 = vunpack.c.l.b16 %v395
    %v684 = vunpack.c.h.b16 %v395
    %v685 = vunpack.c.l.b16 %v396
    %v686 = vunpack.c.l.b16 %v397
    %v687 = vunpack.c.h.b16 %v397
    %v688 = vunpack.c.l.b16 %v398
    %v689 = vunpack.c.l.b16 %v399
    %v690 = vunpack.c.h.b16 %v399
    %v691 = vunpack.c.l.b16 %v400
    %v692 = vunpack.c.l.b16 %v401
    %v693 = vunpack.c.h.b16 %v401
    %v694 = vunpack.c.l.b16 %v402
    %v695 = vunpack.c.l.b16 %v403
    %v696 = vunpack.c.h.b16 %v403
    %v697 = vunpack.c.l.b16 %v404
    %v698 = vunpack.c.l.b16 %v405
    %v699 = vunpack.c.h.b16 %v405
    %v700 = vunpack.c.l.b16 %v406
    %v701 = vunpack.c.l.b16 %v407
    %v702 = vunpack.c.h.b16 %v407
    %v703 = vunpack.c.l.b16 %v408
    %v704 = vunpack.c.l.b16 %v409
    %v705 = vunpack.c.h.b16 %v409
    %v706 = vunpack.c.l.b16 %v410
    %v707 = vunpack.c.l.b16 %v411
    %v708 = vunpack.c.h.b16 %v411
    %v709 = vunpack.c.l.b16 %v412
    %v710 = vunpack.c.l.b16 %v413
    %v711 = vunpack.c.h.b16 %v413
    %v712 = vunpack.c.l.b16 %v414
    %v713 = vunpack.c.l.b16 %v415
    %v714 = vunpack.c.h.b16 %v415
    %v715 = vunpack.c.l.b16 %v416
    %v716 = vunpack.c.l.b16 %v417
    %v717 = vunpack.c.h.b16 %v417
    %v718 = vunpack.c.l.b16 %v418
    %v719 = vunpack.c.l.b16 %v419
    %v720 = vunpack.c.h.b16 %v419
    %v721 = vunpack.c.l.b16 %v420
    %v722 = vunpack.c.l.b16 %v421
    %v723 = vunpack.c.h.b16 %v421
    %v724 = vunpack.c.l.b16 %v422
    %v725 = vunpack.c.l.b16 %v423
    %v726 = vunpack.c.h.b16 %v423
    %v727 = vunpack.c.l.b16 %v424
    %v728 = vunpack.c.l.b16 %v425
    %v729 = vunpack.c.h.b16 %v425
    %v730 = vunpack.c.l.b16 %v426
    %v731 = vunpack.c.l.b16 %v427
    %v732 = vunpack.c.h.b16 %v427
    %v733 = vunpack.c.l.b16 %v428
    %v734 = vunpack.c.l.b16 %v429
    %v735 = vunpack.c.h.b16 %v429
    %v736 = vunpack.c.l.b16 %v430
    %v737 = vunpack.c.l.b16 %v431
    %v738 = vunpack.c.h.b16 %v431
    %v739 = vunpack.c.l.b16 %v432
    %v740 = vunpack.c.l.b16 %v433
    %v741 = vunpack.c.h.b16 %v433
    %v742 = vunpack.c.l.b16 %v434
    %v743 = vunpack.c.l.b16 %v435
    %v744 = vunpack.c.h.b16 %v435
    %v745 = vunpack.c.l.b16 %v436
    %v746 = vunpack.c.l.b16 %v437
    %v747 = vunpack.c.h.b16 %v437
    %v748 = vunpack.c.l.b16 %v438
    %v749 = vunpack.c.l.b16 %v439
    %v750 = vunpack.c.h.b16 %v439
    %v751 = vunpack.c.l.b16 %v440
    %v752 = vunpack.c.l.b16 %v441
    %v753 = vunpack.c.h.b16 %v441
    %v754 = vunpack.c.l.b16 %v442
    %v755 = vunpack.c.l.b16 %v443
    %v756 = vunpack.c.h.b16 %v443
    %v757 = vunpack.c.l.b16 %v444
    %v758 = vunpack.c.l.b16 %v445
    %v759 = vunpack.c.h.b16 %v445
    %v760 = vunpack.c.l.b16 %v446
    %v761 = vunpack.c.l.b16 %v447
    %v762 = vunpack.c.h.b16 %v447
    %v763 = vunpack.c.l.b16 %v448
    %v764 = vunpack.c.l.b16 %v449
    %v765 = vunpack.c.h.b16 %v449
    %v766 = vunpack.c.l.b16 %v450
    %v767 = vunpack.c.l.b16 %v451
    %v768 = vunpack.c.h.b16 %v451
    %v769 = vunpack.c.l.b16 %v452
    %v770 = vunpack.c.l.b16 %v453
    %v771 = vunpack.c.h.b16 %v453
    %v772 = vunpack.c.l.b16 %v454
    %v773 = vunpack.c.l.b16 %v455
    %v774 = vunpack.c.h.b16 %v455
    %v775 = vunpack.c.l.b16 %v456
    %v776 = vunpack.c.l.b16 %v457
    %v777 = vunpack.c.h.b16 %v457
    %v778 = vunpack.c.l.b16 %v458
    %v779 = vpack.c.b16 %v590, %v587
    %v780 = vpack.c.b16 %v591, %v588
    %v781 = vpack.c.b16 %v592, %v589
    %v782 = vpack.c.b16 %v596, %v593
    %v783 = vpack.c.b16 %v597, %v594
    %v784 = vpack.c.b16 %v598, %v595
    %v785 = vpack.c.b16 %v602, %v599
    %v786 = vpack.c.b16 %v603, %v600
    %v787 = vpack.c.b16 %v604, %v601
    %v788 = vpack.c.b16 %v608, %v605
    %v789 = vpack.c.b16 %v609, %v606
    %v790 = vpack.c.b16 %v610, %v607
    %v791 = vpack.c.b16 %v614, %v611
    %v792 = vpack.c.b16 %v615, %v612
    %v793 = vpack.c.b16 %v616, %v613
    %v794 = vpack.c.b16 %v620, %v617
    %v795 = vpack.c.b16 %v621, %v618
    %v796 = vpack.c.b16 %v622, %v619
    %v797 = vpack.c.b16 %v626, %v623
    %v798 = vpack.c.b16 %v627, %v624
    %v799 = vpack.c.b16 %v628, %v625
    %v800 = vpack.c.b16 %v632, %v629
    %v801 = vpack.c.b16 %v633, %v630
    %v802 = vpack.c.b16 %v634, %v631
    %v803 = vpack.c.b16 %v638, %v635
    %v804 = vpack.c.b16 %v639, %v636
    %v805 = vpack.c.b16 %v640, %v637
    %v806 = vpack.c.b16 %v644, %v641
    %v807 = vpack.c.b16 %v645, %v642
    %v808 = vpack.c.b16 %v646, %v643
    %v809 = vpack.c.b16 %v650, %v647
    %v810 = vpack.c.b16 %v651, %v648
    %v811 = vpack.c.b16 %v652, %v649
    %v812 = vpack.c.b16 %v656, %v653
    %v813 = vpack.c.b16 %v657, %v654
    %v814 = vpack.c.b16 %v658, %v655
    %v815 = vpack.c.b16 %v662, %v659
    %v816 = vpack.c.b16 %v663, %v660
    %v817 = vpack.c.b16 %v664, %v661
    %v818 = vpack.c.b16 %v668, %v665
    %v819 = vpack.c.b16 %v669, %v666
    %v820 = vpack.c.b16 %v670, %v667
    %v821 = vpack.c.b16 %v674, %v671
    %v822 = vpack.c.b16 %v675, %v672
    %v823 = vpack.c.b16 %v676, %v673
    %v824 = vpack.c.b16 %v680, %v677
    %v825 = vpack.c.b16 %v681, %v678
    %v826 = vpack.c.b16 %v682, %v679
    %v827 = vpack.c.b16 %v686, %v683
    %v828 = vpack.c.b16 %v687, %v684
    %v829 = vpack.c.b16 %v688, %v685
    %v830 = vpack.c.b16 %v692, %v689
    %v831 = vpack.c.b16 %v693, %v690
    %v832 = vpack.c.b16 %v694, %v691
    %v833 = vpack.c.b16 %v698, %v695
    %v834 = vpack.c.b16 %v699, %v696
    %v835 = vpack.c.b16 %v700, %v697
    %v836 = vpack.c.b16 %v704, %v701
    %v837 = vpack.c.b16 %v705, %v702
    %v838 = vpack.c.b16 %v706, %v703
    %v839 = vpack.c.b16 %v710, %v707
    %v840 = vpack.c.b16 %v711, %v708
    %v841 = vpack.c.b16 %v712, %v709
    %v842 = vpack.c.b16 %v716, %v713
    %v843 = vpack.c.b16 %v717, %v714
    %v844 = vpack.c.b16 %v718, %v715
    %v845 = vpack.c.b16 %v722, %v719
    %v846 = vpack.c.b16 %v723, %v720
    %v847 = vpack.c.b16 %v724, %v721
    %v848 = vpack.c.b16 %v728, %v725
    %v849 = vpack.c.b16 %v729, %v726
    %v850 = vpack.c.b16 %v730, %v727
    %v851 = vpack.c.b16 %v734, %v731
    %v852 = vpack.c.b16 %v735, %v732
    %v853 = vpack.c.b16 %v736, %v733
    %v854 = vpack.c.b16 %v740, %v737
    %v855 = vpack.c.b16 %v741, %v738
    %v856 = vpack.c.b16 %v742, %v739
    %v857 = vpack.c.b16 %v746, %v743
    %v858 = vpack.c.b16 %v747, %v744
    %v859 = vpack.c.b16 %v748, %v745
    %v860 = vpack.c.b16 %v752, %v749
    %v861 = vpack.c.b16 %v753, %v750
    %v862 = vpack.c.b16 %v754, %v751
    %v863 = vpack.c.b16 %v758, %v755
    %v864 = vpack.c.b16 %v759, %v756
    %v865 = vpack.c.b16 %v760, %v757
    %v866 = vpack.c.b16 %v764, %v761
    %v867 = vpack.c.b16 %v765, %v762
    %v868 = vpack.c.b16 %v766, %v763
    %v869 = vpack.c.b16 %v770, %v767
    %v870 = vpack.c.b16 %v771, %v768
    %v871 = vpack.c.b16 %v772, %v769
    %v872 = vpack.c.b16 %v776, %v773
    %v873 = vpack.c.b16 %v777, %v774
    %v874 = vpack.c.b16 %v778, %v775
    %971 = vmatprep.subr.bf16.mxu0 %v801
    %972 = vmatpush1.bf16.msra.mxu0 %v800
    %973 = vmatprep.subr.bf16.mxu0 %v798
    %974 = vmatpush1.bf16.msra.mxu0 %v797
    %975 = vmatprep.subr.bf16.mxu0 %v795
    %976 = vmatpush1.bf16.msra.mxu0 %v794
    %977 = vmatprep.subr.bf16.mxu0 %v792
    %978 = vmatpush1.bf16.msra.mxu0 %v791
    %979 = vmatprep.subr.bf16.mxu0 %v789
    %980 = vmatpush1.bf16.msra.mxu0 %v788
    %981 = vmatprep.subr.bf16.mxu0 %v786
    %982 = vmatpush1.bf16.msra.mxu0 %v785
    %983 = vmatprep.subr.bf16.mxu0 %v783
    %984 = vmatpush1.bf16.msra.mxu0 %v782
    %985 = vmatprep.subr.bf16.mxu0 %v780
    %986 = vmatpush1.bf16.msra.mxu0 %v779
    %987 = vmatprep.subr.bf16.mxu0 %v825
    %988 = vmatpush2.bf16.msra.mxu0 %v824
    %989 = vmatprep.subr.bf16.mxu0 %v822
    %990 = vmatpush2.bf16.msra.mxu0 %v821
    %991 = vmatprep.subr.bf16.mxu0 %v819
    %992 = vmatpush2.bf16.msra.mxu0 %v818
    %993 = vmatprep.subr.bf16.mxu0 %v816
    %994 = vmatpush2.bf16.msra.mxu0 %v815
    %995 = vmatprep.subr.bf16.mxu0 %v813
    %996 = vmatpush2.bf16.msra.mxu0 %v812
    %997 = vmatprep.subr.bf16.mxu0 %v810
    %998 = vmatpush2.bf16.msra.mxu0 %v809
    %999 = vmatprep.subr.bf16.mxu0 %v807
    %1000 = vmatpush2.bf16.msra.mxu0 %v806
    %1001 = vmatprep.subr.bf16.mxu0 %v804
    %1002 = vmatpush2.bf16.msra.mxu0 %v803
    %1003 = vmatprep.mubr.bf16.mxu0 %v328
    %1004 = vmatmul.mubr.bf16.gmra.mxu0 %v327
    %v1005 = vpop.f32.mrf.mxu0
    %v1006 = vadd.f32 %v277, %v1005
    %v1007 = vpop.f32.mrf.mxu0
    %v1008 = vadd.f32 %v279, %v1007
    %v1009 = vpop.f32.mrf.mxu0
    %v1010 = vpop.f32.mrf.mxu0
    %1011 = vdwg.mxu0
    %1012 = vmatprep.subr.bf16.mxu0 %v849
    %1013 = vmatpush1.bf16.msra.mxu0 %v848
    %1014 = vmatprep.subr.bf16.mxu0 %v846
    %1015 = vmatpush1.bf16.msra.mxu0 %v845
    %1016 = vmatprep.subr.bf16.mxu0 %v843
    %1017 = vmatpush1.bf16.msra.mxu0 %v842
    %1018 = vmatprep.subr.bf16.mxu0 %v840
    %1019 = vmatpush1.bf16.msra.mxu0 %v839
    %1020 = vmatprep.subr.bf16.mxu0 %v837
    %1021 = vmatpush1.bf16.msra.mxu0 %v836
    %1022 = vmatprep.subr.bf16.mxu0 %v834
    %1023 = vmatpush1.bf16.msra.mxu0 %v833
    %1024 = vmatprep.subr.bf16.mxu0 %v831
    %1025 = vmatpush1.bf16.msra.mxu0 %v830
    %1026 = vmatprep.subr.bf16.mxu0 %v828
    %1027 = vmatpush1.bf16.msra.mxu0 %v827
    %1028 = vmatprep.subr.bf16.mxu0 %v873
    %1029 = vmatpush2.bf16.msra.mxu0 %v872
    %1030 = vmatprep.subr.bf16.mxu0 %v870
    %1031 = vmatpush2.bf16.msra.mxu0 %v869
    %1032 = vmatprep.subr.bf16.mxu0 %v867
    %1033 = vmatpush2.bf16.msra.mxu0 %v866
    %1034 = vmatprep.subr.bf16.mxu0 %v864
    %1035 = vmatpush2.bf16.msra.mxu0 %v863
    %1036 = vmatprep.subr.bf16.mxu0 %v861
    %1037 = vmatpush2.bf16.msra.mxu0 %v860
    %1038 = vmatprep.subr.bf16.mxu0 %v858
    %1039 = vmatpush2.bf16.msra.mxu0 %v857
    %1040 = vmatprep.subr.bf16.mxu0 %v855
    %1041 = vmatpush2.bf16.msra.mxu0 %v854
    %1042 = vmatprep.subr.bf16.mxu0 %v852
    %1043 = vmatpush2.bf16.msra.mxu0 %v851
    %1044 = vmatprep.mubr.bf16.mxu0 %v330
    %1045 = vmatmul.mubr.bf16.gmra.mxu0 %v329
    %v1046 = vpop.f32.mrf.mxu0
    %v1047 = vadd.f32 %v1006, %v1046
    %v1048 = vpop.f32.mrf.mxu0
    %v1049 = vadd.f32 %v1008, %v1048
    %v1050 = vpop.f32.mrf.mxu0
    %v1051 = vpop.f32.mrf.mxu0
    %1052 = vdwg.mxu0
    %1053 = vmatprep.subr.bf16.mxu0 0
    %1054 = vmatpush1.bf16.msra.mxu0 %v802
    %1055 = vmatprep.subr.bf16.mxu0 0
    %1056 = vmatpush1.bf16.msra.mxu0 %v799
    %1057 = vmatprep.subr.bf16.mxu0 0
    %1058 = vmatpush1.bf16.msra.mxu0 %v796
    %1059 = vmatprep.subr.bf16.mxu0 0
    %1060 = vmatpush1.bf16.msra.mxu0 %v793
    %1061 = vmatprep.subr.bf16.mxu0 0
    %1062 = vmatpush1.bf16.msra.mxu0 %v790
    %1063 = vmatprep.subr.bf16.mxu0 0
    %1064 = vmatpush1.bf16.msra.mxu0 %v787
    %1065 = vmatprep.subr.bf16.mxu0 0
    %1066 = vmatpush1.bf16.msra.mxu0 %v784
    %1067 = vmatprep.subr.bf16.mxu0 0
    %1068 = vmatpush1.bf16.msra.mxu0 %v781
    %1069 = vmatprep.subr.bf16.mxu0 0
    %1070 = vmatpush2.bf16.msra.mxu0 %v826
    %1071 = vmatprep.subr.bf16.mxu0 0
    %1072 = vmatpush2.bf16.msra.mxu0 %v823
    %1073 = vmatprep.subr.bf16.mxu0 0
    %1074 = vmatpush2.bf16.msra.mxu0 %v820
    %1075 = vmatprep.subr.bf16.mxu0 0
    %1076 = vmatpush2.bf16.msra.mxu0 %v817
    %1077 = vmatprep.subr.bf16.mxu0 0
    %1078 = vmatpush2.bf16.msra.mxu0 %v814
    %1079 = vmatprep.subr.bf16.mxu0 0
    %1080 = vmatpush2.bf16.msra.mxu0 %v811
    %1081 = vmatprep.subr.bf16.mxu0 0
    %1082 = vmatpush2.bf16.msra.mxu0 %v808
    %1083 = vmatprep.subr.bf16.mxu0 0
    %1084 = vmatpush2.bf16.msra.mxu0 %v805
    %1085 = vmatprep.mubr.bf16.mxu0 %v328
    %1086 = vmatmul.mubr.bf16.gmra.mxu0 %v327
    %v1087 = vpop.f32.mrf.mxu0
    %v1088 = vadd.f32 %v318, %v1087
    %v1089 = vpop.f32.mrf.mxu0
    %v1090 = vpop.f32.mrf.mxu0
    %v1091 = vpop.f32.mrf.mxu0
    %1092 = vdwg.mxu0
    %1093 = vmatprep.subr.bf16.mxu0 0
    %1094 = vmatpush1.bf16.msra.mxu0 %v850
    %1095 = vmatprep.subr.bf16.mxu0 0
    %1096 = vmatpush1.bf16.msra.mxu0 %v847
    %1097 = vmatprep.subr.bf16.mxu0 0
    %1098 = vmatpush1.bf16.msra.mxu0 %v844
    %1099 = vmatprep.subr.bf16.mxu0 0
    %1100 = vmatpush1.bf16.msra.mxu0 %v841
    %1101 = vmatprep.subr.bf16.mxu0 0
    %1102 = vmatpush1.bf16.msra.mxu0 %v838
    %1103 = vmatprep.subr.bf16.mxu0 0
    %1104 = vmatpush1.bf16.msra.mxu0 %v835
    %1105 = vmatprep.subr.bf16.mxu0 0
    %1106 = vmatpush1.bf16.msra.mxu0 %v832
    %1107 = vmatprep.subr.bf16.mxu0 0
    %1108 = vmatpush1.bf16.msra.mxu0 %v829
    %1109 = vmatprep.subr.bf16.mxu0 0
    %1110 = vmatpush2.bf16.msra.mxu0 %v874
    %1111 = vmatprep.subr.bf16.mxu0 0
    %1112 = vmatpush2.bf16.msra.mxu0 %v871
    %1113 = vmatprep.subr.bf16.mxu0 0
    %1114 = vmatpush2.bf16.msra.mxu0 %v868
    %1115 = vmatprep.subr.bf16.mxu0 0
    %1116 = vmatpush2.bf16.msra.mxu0 %v865
    %1117 = vmatprep.subr.bf16.mxu0 0
    %1118 = vmatpush2.bf16.msra.mxu0 %v862
    %1119 = vmatprep.subr.bf16.mxu0 0
    %1120 = vmatpush2.bf16.msra.mxu0 %v859
    %1121 = vmatprep.subr.bf16.mxu0 0
    %1122 = vmatpush2.bf16.msra.mxu0 %v856
    %1123 = vmatprep.subr.bf16.mxu0 0
    %1124 = vmatpush2.bf16.msra.mxu0 %v853
    %1125 = vmatprep.mubr.bf16.mxu0 %v330
    %1126 = vmatmul.mubr.bf16.gmra.mxu0 %v329
    %v1127 = vpop.f32.mrf.mxu0
    %v1128 = vadd.f32 %v1088, %v1127
    %v1129 = vpop.f32.mrf.mxu0
    %v1130 = vpop.f32.mrf.mxu0
    %v1131 = vpop.f32.mrf.mxu0
    %1132 = vdwg.mxu0
    %v1133 = vmax.f32 %v1047, 0.0
    %v1134 = vmax.f32 %v1049, 0.0
    %v1135 = vmax.f32 %v1128, 0.0
    %v1136 = vld [vmem:[%s4] sm:$0x7]
    %v1138 = vlaneseq
    %v1139 = vshrl.u32 %v1138, 7
    %v1140 = vsub.s32 0, %v1139
    %v1141 = vrot.slane %v1136, %v1140
    %v1142 = vlaneseq
    %v1143 = vshrl.u32 %v1142, 7
    %v1144 = vsub.s32 1, %v1143
    %v1145 = vrot.slane %v1136, %v1144
    %v1146 = vlaneseq
    %v1147 = vshrl.u32 %v1146, 7
    %v1148 = vsub.s32 2, %v1147
    %v1149 = vrot.slane %v1136, %v1148
    %v1153 = vmul.f32 %v1133, %v1141
    %v1154 = vmul.f32 %v1134, %v1145
    %v1155 = vmul.f32 %v1135, %v1149
    %v1156 = vadd.f32 %v1153, %v1154
    %v1157 = vadd.f32 %v1156, %v1155
    %1158 = vadd.xlane.f32.xlu0 %v1157
    %v1159 = vpop.xlane.xlu0 %1158
    %v1160 = vld [vmem:[#allocation2] sm:$0x1]
    %v1162 = vlaneseq
    %v1163 = vshrl.u32 %v1162, 7
    %v1164 = vsub.s32 0, %v1163
    %v1165 = vrot.slane %v1160, %v1164
    %v1167 = vadd.f32 %v1159, %v1165
    %vm1168 = vcmask 7168
    %1169 = vst.msk [vmem:[%s6] sm:$0xff] %vm1168, %v1167
    // Predicated region
    $region34: #{critic_forward.1} parent=1 // pred_check
      _
    $region35: #{critic_forward.1} parent=1 // pred_check_branch
      %1171 = sbr.rel (0) target = $region37
    $region36: #{critic_forward.1} parent=1 // pred_region
      _
    $region37: #{critic_forward.1} parent=1 // pred_fallthru
      _
    // Predicated region
    $region38: #{critic_forward.1} parent=1 // pred_check
      _
    $region39: #{critic_forward.1} parent=1 // pred_check_branch
      %1173 = sbr.rel (0) target = $region41
    $region40: #{critic_forward.1} parent=1 // pred_region
      _
    $region41: #{critic_forward.1} parent=1 // pred_fallthru
      _
    %1174 = vsyncpa [#allocation4], 1
    %1175 = vsyncpa [#allocation6], 1

</llo_original>
